<compile_context>
chip_gen: v7x
topology: tpu7x:2x2x1
jax: 0.10.0
libtpu: 0.0.40
codegen_flags: <defaults>
</compile_context>

<pallas_src>
import functools

import jax
import jax.numpy as jnp
from jax import lax
from jax.experimental import pallas as pl
from jax.experimental.pallas import tpu as pltpu


def _round_up(x: int, m: int) -> int:
    return ((x + m - 1) // m) * m


@functools.lru_cache(maxsize=1)
def _tpu_config():
    """Returns (vmem_budget_bytes, bf16_vpu, is_v7, target_tm, target_tf)."""
    kind = ""
    try:
        kind = jax.devices()[0].device_kind.lower()
    except Exception:
        pass
    is_v7 = "v7" in kind
    bf16_vpu = ("v6" in kind) or is_v7           # v5e has no bf16 VPU/EUP
    try:
        vmem_cap = int(pltpu.get_tpu_info().vmem_capacity_bytes)
    except Exception:
        vmem_cap = (64 if is_v7 else 128) * 1024 * 1024
    # 80% of physical: ~102 MiB on 128-MiB parts, ~51 MiB on v7x (leaves
    # headroom for compiler-internal scratch / semaphores).
    vmem_budget = int(0.8 * vmem_cap)
    if "v6" in kind:
        target_tm = 1024      # needs tm >= ~700 to leave the HBM roofline
    elif is_v7:
        target_tm = 512       # tm >= ~400 suffices; VMEM is only 64 MiB
    else:
        target_tm = 512       # v5e / unknown
    target_tf = 1024 if is_v7 else 2048
    return vmem_budget, bf16_vpu, is_v7, target_tm, target_tf


def _vmem_fast(tm, d_pad, dff_pad, itemsize):
    """Conservative VMEM footprint of the weights-resident path."""
    return (2 * tm * d_pad * itemsize               # x tiles (double-buffered)
            + 2 * tm * d_pad * itemsize             # out tiles
            + 2 * 2 * d_pad * dff_pad * itemsize    # W1 + W2 (2 bufs each)
            + 2 * tm * dff_pad * 4                  # h / gelu(h) intermediates
            + 2 * tm * d_pad * 4)                   # residual / LN temporaries


def _vmem_blocked(tm, tf, d_pad, itemsize):
    """Conservative VMEM footprint of the d_ff-blocked path."""
    return (2 * tm * d_pad * itemsize               # x tiles
            + 2 * tm * d_pad * itemsize             # out tiles
            + 2 * d_pad * tf * itemsize             # W1 slab (double-buffered)
            + 2 * tf * d_pad * itemsize             # W2 slab (double-buffered)
            + tm * d_pad * 4                        # f32 accumulator scratch
            + 2 * tm * tf * 4                       # h / gelu(h)
            + 2 * tm * d_pad * 4)                   # residual / LN temporaries


def _gelu(h, approx: bool):
    if approx:
        # tanh approximation -> transcendental goes to the EUP slot.
        c = 0.7978845608028654
        return 0.5 * h * (1.0 + jnp.tanh(c * (h + 0.044715 * (h * h * h))))
    # Exact erf GELU (matches torch.nn.GELU() default), evaluated in f32.
    return 0.5 * h * (1.0 + lax.erf(h * 0.7071067811865476))


def _residual_layernorm(z, d_model: int, eps: float, out_dtype):
    """z is f32, (tm, D_pad).  Padded columns of z are exactly zero."""
    d_pad = z.shape[-1]
    mean = jnp.sum(z, axis=-1, keepdims=True) * (1.0 / d_model)
    if d_pad == d_model:
        zc = z - mean
    else:
        col = lax.broadcasted_iota(jnp.int32, z.shape, 1)
        zc = jnp.where(col < d_model, z - mean, 0.0)
    var = jnp.sum(zc * zc, axis=-1, keepdims=True) * (1.0 / d_model)
    return (zc * lax.rsqrt(var + eps)).astype(out_dtype)


def _ffn_resident_kernel(x_ref, w1_ref, w2_ref, o_ref, *,
                         d_model, eps, gelu_approx, gelu_dtype):
    # Weights are fetched once for the whole kernel (constant index_map);
    # grid is the row axis only.
    x = x_ref[...]
    h = jnp.dot(x, w1_ref[...], preferred_element_type=jnp.float32)
    g = _gelu(h.astype(gelu_dtype), gelu_approx)
    y = jnp.dot(g.astype(w2_ref.dtype), w2_ref[...],
                preferred_element_type=jnp.float32)
    z = y + x.astype(jnp.float32)
    o_ref[...] = _residual_layernorm(z, d_model, eps, o_ref.dtype)


def _ffn_blocked_kernel(x_ref, w1_ref, w2_ref, o_ref, acc_ref, *,
                        d_model, eps, gelu_approx, gelu_dtype):
    # d_ff is blocked on the inner ("arbitrary") grid axis; NOTE: W1/W2 slabs
    # ARE re-streamed from HBM once per row block on this path.
    j = pl.program_id(1)

    @pl.when(j == 0)
    def _init():
        acc_ref[...] = jnp.zeros_like(acc_ref)

    x = x_ref[...]
    h = jnp.dot(x, w1_ref[...], preferred_element_type=jnp.float32)
    g = _gelu(h.astype(gelu_dtype), gelu_approx)
    acc_ref[...] += jnp.dot(g.astype(w2_ref.dtype), w2_ref[...],
                            preferred_element_type=jnp.float32)

    @pl.when(j == pl.num_programs(1) - 1)
    def _finalize():
        z = acc_ref[...] + x_ref[...].astype(jnp.float32)
        o_ref[...] = _residual_layernorm(z, d_model, eps, o_ref.dtype)


@functools.partial(jax.jit,
                   static_argnames=("block_rows", "block_ff", "gelu_approx",
                                    "eps"))
def feed_forward_net(x, w1, w2, *, block_rows=None, block_ff=None,
                     gelu_approx=True, eps=1e-5):
    """x: [batch, len, d_model]; w1: [d_model, d_ff]; w2: [d_ff, d_model]."""
    B, L, D = x.shape
    d_ff = w1.shape[1]
    assert w1.shape == (D, d_ff) and w2.shape == (d_ff, D)

    vmem_budget, bf16_vpu, is_v7, target_tm, target_tf = _tpu_config()

    N = B * L
    dtype = x.dtype
    itemsize = jnp.dtype(dtype).itemsize
    D_pad = _round_up(D, 128)          # lane-dense feature dim
    dff128 = _round_up(d_ff, 128)

    # GELU precision: bf16 on v6e/v7x when operands are bf16; f32 otherwise
    # (and always on v5e, and always for the exact-erf path).
    gelu_dtype = jnp.float32
    if gelu_approx and bf16_vpu and jnp.dtype(dtype) == jnp.dtype(jnp.bfloat16):
        gelu_dtype = jnp.bfloat16

    # ---- path / tile selection ---------------------------------------------
    w_resident_bytes = 2 * 2 * D_pad * dff128 * itemsize     # both slabs, 2 bufs
    resident = (block_ff is None) and (w_resident_bytes <= vmem_budget // 3)

    def pick_tm(fits, user_tm):
        if user_tm is not None:
            return max(16, _round_up(int(user_tm), 16))
        cap = max(16, min(target_tm, _round_up(N, 16)))
        nblk = max(1, pl.cdiv(N, cap))
        while True:
            tm = max(16, _round_up(pl.cdiv(N, nblk), 16))
            if tm <= 16 or fits(tm):
                return tm
            nblk += 1

    if resident:
        dff_pad = dff128
        tm = pick_tm(lambda t: _vmem_fast(t, D_pad, dff_pad, itemsize)
                     <= vmem_budget, block_rows)
        tf = dff_pad
    else:
        if block_ff is not None:
            tf = max(128, _round_up(int(block_ff), 128))
        else:
            cap_tf = max(128, min(target_tf, dff128))
            ntf = max(1, pl.cdiv(d_ff, cap_tf))
            tf = max(128, _round_up(pl.cdiv(d_ff, ntf), 128))
            # Keep double-buffered weight slabs within half the budget
            # (important on v7x's 64-MiB VMEM).
            while tf > 128 and 2 * 2 * D_pad * tf * itemsize > vmem_budget // 2:
                tf = max(128, _round_up(tf // 2, 128))
        dff_pad = _round_up(d_ff, tf)
        tm = pick_tm(lambda t: _vmem_blocked(t, tf, D_pad, itemsize)
                     <= vmem_budget, block_rows)

    # Keep >= 2 row blocks on v7x so both TensorCores get work
    # ("parallel" row axis is the only axis that shards across cores).
    if is_v7 and block_rows is None and N >= 32 and _round_up(N, tm) // tm < 2:
        tm = max(16, _round_up(pl.cdiv(N, 2), 16))

    N_pad = _round_up(N, tm)
    n_row_blocks = N_pad // tm

    # ---- padding (exact: zero pads through matmul / GELU / residual; LN masks).
    # NOTE: ideally weights are pre-padded / pre-cast once at setup; the
    # pad/astype below are elided by XLA when shapes/dtypes already match.
    x2 = jnp.pad(x.reshape(N, D), ((0, N_pad - N), (0, D_pad - D)))
    w1p = w1.astype(dtype)
    w2p = w2.astype(dtype)
    if (D_pad, dff_pad) != (D, d_ff):
        w1p = jnp.pad(w1p, ((0, D_pad - D), (0, dff_pad - d_ff)))
        w2p = jnp.pad(w2p, ((0, dff_pad - d_ff), (0, D_pad - D)))

    # ---- cost estimate (weight traffic depends on the chosen path) ----------
    w_bytes = 2 * D_pad * dff_pad * itemsize
    cost = pl.CostEstimate(
        flops=4 * N * D * d_ff,
        transcendentals=N * d_ff,
        bytes_accessed=(2 * N_pad * D_pad * itemsize
                        + (w_bytes if resident else n_row_blocks * w_bytes)))

    common = dict(d_model=D, eps=float(eps), gelu_approx=bool(gelu_approx),
                  gelu_dtype=gelu_dtype)

    if resident:
        out2 = pl.pallas_call(
            functools.partial(_ffn_resident_kernel, **common),
            out_shape=jax.ShapeDtypeStruct((N_pad, D_pad), dtype),
            grid_spec=pltpu.PrefetchScalarGridSpec(
                num_scalar_prefetch=0,
                grid=(n_row_blocks,),
                in_specs=[
                    pl.BlockSpec((tm, D_pad), lambda i: (i, 0)),      # x tile
                    pl.BlockSpec((D_pad, dff_pad), lambda i: (0, 0)),  # W1 resident
                    pl.BlockSpec((dff_pad, D_pad), lambda i: (0, 0)),  # W2 resident
                ],
                out_specs=pl.BlockSpec((tm, D_pad), lambda i: (i, 0)),
            ),
            compiler_params=pltpu.CompilerParams(
                dimension_semantics=("parallel",),
                vmem_limit_bytes=vmem_budget),
            cost_estimate=cost,
        )(x2, w1p, w2p)
    else:
        out2 = pl.pallas_call(
            functools.partial(_ffn_blocked_kernel, **common),
            out_shape=jax.ShapeDtypeStruct((N_pad, D_pad), dtype),
            grid_spec=pltpu.PrefetchScalarGridSpec(
                num_scalar_prefetch=0,
                grid=(n_row_blocks, dff_pad // tf),
                in_specs=[
                    pl.BlockSpec((tm, D_pad), lambda i, j: (i, 0)),   # x tile
                    pl.BlockSpec((D_pad, tf), lambda i, j: (0, j)),   # W1 slab
                    pl.BlockSpec((tf, D_pad), lambda i, j: (j, 0)),   # W2 slab
                ],
                out_specs=pl.BlockSpec((tm, D_pad), lambda i, j: (i, 0)),
                scratch_shapes=[pltpu.VMEM((tm, D_pad), jnp.float32)],
            ),
            compiler_params=pltpu.CompilerParams(
                dimension_semantics=("parallel", "arbitrary"),
                vmem_limit_bytes=vmem_budget),
            cost_estimate=cost,
        )(x2, w1p, w2p)

    return out2[:N, :D].reshape(B, L, D)


def feed_forward_net_ref(x, w1, w2, eps=1e-5, gelu_approx=True):
    """Pure-JAX reference for correctness checking."""
    h = x @ w1
    if gelu_approx:
        c = 0.7978845608028654
        g = 0.5 * h * (1.0 + jnp.tanh(c * (h + 0.044715 * h * h * h)))
    else:
        g = 0.5 * h * (1.0 + lax.erf(h * 0.7071067811865476))
    y = g @ w2
    z = y + x
    mean = jnp.mean(z, axis=-1, keepdims=True)
    var = jnp.mean(jnp.square(z - mean), axis=-1, keepdims=True)
    return (z - mean) * lax.rsqrt(var + eps)


if __name__ == "__main__":
    keys = jax.random.split(jax.random.PRNGKey(0), 6)

    # ---- Case 1: module defaults (d_model=64, d_ff=512), small batch/len ----
    d_model, d_ff, batch, seqlen = 64, 512, 2, 8
    x = jax.random.normal(keys[0], (batch, seqlen, d_model), jnp.float32)
    w1 = jax.random.normal(keys[1], (d_model, d_ff), jnp.float32) * d_model ** -0.5
    w2 = jax.random.normal(keys[2], (d_ff, d_model), jnp.float32) * d_ff ** -0.5

    out = feed_forward_net(x, w1, w2)             # resident fast path, tanh GELU
    jax.block_until_ready(out)
    ref = feed_forward_net_ref(x, w1, w2, gelu_approx=True)
    assert out.shape == (batch, seqlen, d_model)
    assert jnp.allclose(out, ref, atol=1e-4, rtol=1e-4), "f32 mismatch (case 1)"

    # Exact-erf opt-in path (bit-parity with torch.nn.GELU()).
    out_e = feed_forward_net(x, w1, w2, gelu_approx=False)
    jax.block_until_ready(out_e)
    ref_e = feed_forward_net_ref(x, w1, w2, gelu_approx=False)
    assert jnp.allclose(out_e, ref_e, atol=1e-4, rtol=1e-4), "erf mismatch"

    # ---- Case 2: ragged shapes, forced d_ff-blocked (accumulator) path ------
    dm2, dff2, b2, l2 = 96, 704, 3, 50
    x2 = jax.random.normal(keys[3], (b2, l2, dm2), jnp.float32)
    w1b = jax.random.normal(keys[4], (dm2, dff2), jnp.float32) * dm2 ** -0.5
    w2b = jax.random.normal(keys[5], (dff2, dm2), jnp.float32) * dff2 ** -0.5
    out2 = feed_forward_net(x2, w1b, w2b, block_rows=64, block_ff=256)
    jax.block_until_ready(out2)
    ref2 = feed_forward_net_ref(x2, w1b, w2b, gelu_approx=True)
    assert out2.shape == (b2, l2, dm2)
    assert jnp.allclose(out2, ref2, atol=2e-4, rtol=2e-4), "f32 mismatch (case 2)"

    # ---- Case 3: bf16 operands (bf16 GELU on v6e/v7x), f32 accumulate / LN --
    xb, w1c, w2c = (a.astype(jnp.bfloat16) for a in (x, w1, w2))
    out3 = feed_forward_net(xb, w1c, w2c)
    jax.block_until_ready(out3)
    ref3 = feed_forward_net_ref(xb.astype(jnp.float32),
                                w1c.astype(jnp.float32),
                                w2c.astype(jnp.float32), gelu_approx=True)
    assert out3.dtype == jnp.bfloat16
    assert jnp.allclose(out3.astype(jnp.float32), ref3, atol=1e-1, rtol=1e-1), \
        "bf16 mismatch (case 3)"

    print("KERNEL_OK")
</pallas_src>

<mosaic_0001>
module attributes {stable_mosaic.version = 11 : i64} {
  func.func @_ffn_resident_kernel(%arg0: i32, %arg1: memref<16x128xf32, #tpu.memory_space<vmem>>, %arg2: memref<128x512xf32, #tpu.memory_space<vmem>>, %arg3: memref<512x128xf32, #tpu.memory_space<vmem>>, %arg4: memref<16x128xf32, #tpu.memory_space<vmem>>) attributes {dimension_semantics = [#tpu.dimension_semantics<parallel>], iteration_bounds = array<i64: 1>, scalar_prefetch = 0 : i64, scratch_operands = 0 : i64, tpu.core_type = #tpu.core_type<tc>, window_params = [{transform_indices = @transform_0, window_bounds = array<i64: 16, 128>}, {pipeline_mode = #tpu.pipeline_mode<synchronous>, transform_indices = @transform_1, window_bounds = array<i64: 128, 512>}, {pipeline_mode = #tpu.pipeline_mode<synchronous>, transform_indices = @transform_2, window_bounds = array<i64: 512, 128>}, {transform_indices = @transform_3, window_bounds = array<i64: 16, 128>}]} {
    %c0 = arith.constant 0 : index
    %c0_0 = arith.constant 0 : index
    %0 = vector.load %arg1[%c0, %c0_0] : memref<16x128xf32, #tpu.memory_space<vmem>>, vector<16x128xf32>
    %c0_1 = arith.constant 0 : index
    %c0_2 = arith.constant 0 : index
    %1 = vector.load %arg2[%c0_1, %c0_2] : memref<128x512xf32, #tpu.memory_space<vmem>>, vector<128x512xf32>
    %cst = arith.constant dense<0.000000e+00> : vector<16x512xf32>
    %2 = tpu.matmul %0, %1, %cst {dimension_numbers = #tpu.dot_dimension_numbers<[1], [0], [0], [1], [0, 0, 1, 1], [], []>} : vector<16x128xf32>, vector<128x512xf32>, vector<16x512xf32> -> vector<16x512xf32>
    %cst_3 = arith.constant 5.000000e-01 : f32
    %3 = vector.broadcast %cst_3 : f32 to vector<16x512xf32>
    %4 = arith.mulf %3, %2 : vector<16x512xf32>
    %5 = arith.mulf %2, %2 : vector<16x512xf32>
    %6 = arith.mulf %5, %2 : vector<16x512xf32>
    %cst_4 = arith.constant 4.471500e-02 : f32
    %7 = vector.broadcast %cst_4 : f32 to vector<16x512xf32>
    %8 = arith.mulf %7, %6 : vector<16x512xf32>
    %9 = arith.addf %2, %8 : vector<16x512xf32>
    %cst_5 = arith.constant 0.797884583 : f32
    %10 = vector.broadcast %cst_5 : f32 to vector<16x512xf32>
    %11 = arith.mulf %10, %9 : vector<16x512xf32>
    %12 = math.tanh %11 : vector<16x512xf32>
    %cst_6 = arith.constant 1.000000e+00 : f32
    %13 = vector.broadcast %cst_6 : f32 to vector<16x512xf32>
    %14 = arith.addf %13, %12 : vector<16x512xf32>
    %15 = arith.mulf %4, %14 : vector<16x512xf32>
    %c0_7 = arith.constant 0 : index
    %c0_8 = arith.constant 0 : index
    %16 = vector.load %arg3[%c0_7, %c0_8] : memref<512x128xf32, #tpu.memory_space<vmem>>, vector<512x128xf32>
    %cst_9 = arith.constant dense<0.000000e+00> : vector<16x128xf32>
    %17 = tpu.matmul %15, %16, %cst_9 {dimension_numbers = #tpu.dot_dimension_numbers<[1], [0], [0], [1], [0, 0, 1, 1], [], []>} : vector<16x512xf32>, vector<512x128xf32>, vector<16x128xf32> -> vector<16x128xf32>
    %18 = arith.addf %17, %0 : vector<16x128xf32>
    %cst_10 = arith.constant dense<0.000000e+00> : vector<16xf32>
    %19 = vector.multi_reduction <add>, %18, %cst_10 [1] : vector<16x128xf32> to vector<16xf32>
    %20 = vector.shape_cast %19 : vector<16xf32> to vector<16x1xf32>
    %cst_11 = arith.constant 1.562500e-02 : f32
    %21 = vector.broadcast %cst_11 : f32 to vector<16x1xf32>
    %22 = arith.mulf %20, %21 : vector<16x1xf32>
    %23 = tpu.iota {dimensions = array<i32: 1>} : vector<16x128xi32>
    %c64_i32 = arith.constant 64 : i32
    %24 = vector.broadcast %c64_i32 : i32 to vector<16x128xi32>
    %25 = arith.cmpi slt, %23, %24 : vector<16x128xi32>
    %26 = vector.broadcast %22 : vector<16x1xf32> to vector<16x128xf32>
    %27 = arith.subf %18, %26 : vector<16x128xf32>
    %cst_12 = arith.constant 0.000000e+00 : f32
    %28 = vector.broadcast %cst_12 : f32 to vector<16x128xf32>
    %29 = arith.select %25, %27, %28 : vector<16x128xi1>, vector<16x128xf32>
    %30 = arith.mulf %29, %29 : vector<16x128xf32>
    %cst_13 = arith.constant dense<0.000000e+00> : vector<16xf32>
    %31 = vector.multi_reduction <add>, %30, %cst_13 [1] : vector<16x128xf32> to vector<16xf32>
    %32 = vector.shape_cast %31 : vector<16xf32> to vector<16x1xf32>
    %cst_14 = arith.constant 1.562500e-02 : f32
    %33 = vector.broadcast %cst_14 : f32 to vector<16x1xf32>
    %34 = arith.mulf %32, %33 : vector<16x1xf32>
    %cst_15 = arith.constant 9.99999974E-6 : f32
    %35 = vector.broadcast %cst_15 : f32 to vector<16x1xf32>
    %36 = arith.addf %34, %35 : vector<16x1xf32>
    %37 = math.rsqrt %36 : vector<16x1xf32>
    %38 = vector.broadcast %37 : vector<16x1xf32> to vector<16x128xf32>
    %39 = arith.mulf %29, %38 : vector<16x128xf32>
    %c0_16 = arith.constant 0 : index
    %c0_17 = arith.constant 0 : index
    %40 = vector.load %arg4[%c0_16, %c0_17] : memref<16x128xf32, #tpu.memory_space<vmem>>, vector<16x128xf32>
    tpu.vector_store %arg4[%c0_16, %c0_17], %39 {strides = array<i32>} : memref<16x128xf32, #tpu.memory_space<vmem>>, vector<16x128xf32>,
    return
  }
  func.func @transform_0(%arg0: i32) -> (i32, i32) {
    %c0_i32 = arith.constant 0 : i32
    %c0_i32_0 = arith.constant 0 : i32
    return %arg0, %c0_i32 : i32, i32
  }
  func.func @transform_1(%arg0: i32) -> (i32, i32) {
    %c0_i32 = arith.constant 0 : i32
    %c0_i32_0 = arith.constant 0 : i32
    %c0_i32_1 = arith.constant 0 : i32
    return %c0_i32, %c0_i32_0 : i32, i32
  }
  func.func @transform_2(%arg0: i32) -> (i32, i32) {
    %c0_i32 = arith.constant 0 : i32
    %c0_i32_0 = arith.constant 0 : i32
    %c0_i32_1 = arith.constant 0 : i32
    return %c0_i32, %c0_i32_0 : i32, i32
  }
  func.func @transform_3(%arg0: i32) -> (i32, i32) {
    %c0_i32 = arith.constant 0 : i32
    %c0_i32_0 = arith.constant 0 : i32
    return %arg0, %c0_i32 : i32, i32
  }
}

</mosaic_0001>

<llo_original>
// kernel: feed_forward_net.1
$region0: #{feed_forward_net.1}
  #allocation0 [shape = 'u32[]', space=smem, size = 0x4, offset = 0x4, fixed_abs, tag = 'smem constant byte address 0x4 - core index']
  #allocation1 [shape = 'u32[144,128]{1,0:T(1,128)}', space=vmem, size = 0x12000, scoped, tag = 'internal scratch']
  %s0 = inlined_call_operand.hbm [shape: f32[16,128], index: 0, kind: input, shape index: {}]
  %s1 = inlined_call_operand.hbm [shape: f32[128,512], index: 1, kind: input, shape index: {}]
  %s2 = inlined_call_operand.hbm [shape: f32[512,128], index: 2, kind: input, shape index: {}]
  %s3 = inlined_call_operand.hbm [shape: f32[16,128], index: 3, kind: output, shape index: {}]
  %s4 = sld [smem:[#allocation0]]
  $region34: #{feed_forward_net.1} parent=0
    _
  %s6 = ssub.s32 1, %s4
  %s7 = scalar_select 0, %s6, %s4
  $region1: #{feed_forward_net.1} parent=0
    #allocation2 [shape = 'u8[8192]{0}', space=vmem, size = 0x2000, scoped, tag = 'input window, operand 0, single buffered']
    #allocation3 [shape = 's32[1]{0}', space=sflag, size = 0x4, scoped, tag = 'scoped memory for feed_forward_net.1']
    #allocation4 [shape = 's32[1]{0}', space=sflag, size = 0x4, scoped, tag = 'scoped memory for feed_forward_net.1']
    #allocation5 [shape = 'u8[262144]{0}', space=vmem, size = 0x40000, scoped, tag = 'input window, operand 1, single buffered']
    #allocation6 [shape = 's32[1]{0}', space=sflag, size = 0x4, scoped, tag = 'scoped memory for feed_forward_net.1']
    #allocation7 [shape = 'u8[262144]{0}', space=vmem, size = 0x40000, scoped, tag = 'input window, operand 2, single buffered']
    #allocation8 [shape = 'u8[8192]{0}', space=vmem, size = 0x2000, scoped, tag = 'output window, operand 0, single buffered']
    %8 = vsyncpa [#allocation3], 0
    %9 = vsyncpa [#allocation6], 0
    %10 = vsyncpa [#allocation4], 0
    // Predicated region
    $region2: #{feed_forward_net.1} parent=1 // pred_check
      _
    $region3: #{feed_forward_net.1} parent=1 // pred_check_branch
      %12 = sbr.rel (0) target = $region5
    $region4: #{feed_forward_net.1} parent=1 // pred_region
      %s14 = ssub.s32 256, 256
      %15 = vsyncadd [#allocation3], %s14
      %s16 = sshll.u32 [#allocation2], 4
      %s17 = int_to_ptr.vmem [resolvable:$true] %s16
      %22 = dma.hbm_to_vmem [thread:$0]  %s0, 256, %s17, [#allocation3], 128, 128, 8
    $region5: #{feed_forward_net.1} parent=1 // pred_fallthru
      _
    // Predicated region
    $region6: #{feed_forward_net.1} parent=1 // pred_check
      _
    $region7: #{feed_forward_net.1} parent=1 // pred_check_branch
      %24 = sbr.rel (0) target = $region9
    $region8: #{feed_forward_net.1} parent=1 // pred_region
      %s26 = ssub.s32 8192, 8192
      %27 = vsyncadd [#allocation6], %s26
      %s28 = sshll.u32 [#allocation5], 4
      %s29 = int_to_ptr.vmem [resolvable:$true] %s28
      %34 = dma.hbm_to_vmem [thread:$0]  %s1, 8192, %s29, [#allocation6], 512, 512, 32
    $region9: #{feed_forward_net.1} parent=1 // pred_fallthru
      _
    // Predicated region
    $region10: #{feed_forward_net.1} parent=1 // pred_check
      _
    $region11: #{feed_forward_net.1} parent=1 // pred_check_branch
      %36 = sbr.rel (0) target = $region13
    $region12: #{feed_forward_net.1} parent=1 // pred_region
      %s38 = ssub.s32 8192, 8192
      %39 = vsyncadd [#allocation6], %s38
      %s40 = sshll.u32 [#allocation7], 4
      %s41 = int_to_ptr.vmem [resolvable:$true] %s40
      %46 = dma.hbm_to_vmem [thread:$0]  %s2, 8192, %s41, [#allocation6], 128, 128, 8
    $region13: #{feed_forward_net.1} parent=1 // pred_fallthru
      _
    // Predicated region
    $region14: #{feed_forward_net.1} parent=1 // pred_check
      _
    $region15: #{feed_forward_net.1} parent=1 // pred_check_branch
      %48 = sbr.rel (0) target = $region17
    $region16: #{feed_forward_net.1} parent=1 // pred_region
      %49 = dma.done [#allocation3], 256
    $region17: #{feed_forward_net.1} parent=1 // pred_fallthru
      _
    // Predicated region
    $region18: #{feed_forward_net.1} parent=1 // pred_check
      _
    $region19: #{feed_forward_net.1} parent=1 // pred_check_branch
      %51 = sbr.rel (0) target = $region21
    $region20: #{feed_forward_net.1} parent=1 // pred_region
      %52 = dma.done [#allocation6], 8192
    $region21: #{feed_forward_net.1} parent=1 // pred_fallthru
      _
    // Predicated region
    $region22: #{feed_forward_net.1} parent=1 // pred_check
      _
    $region23: #{feed_forward_net.1} parent=1 // pred_check_branch
      %54 = sbr.rel (0) target = $region25
    $region24: #{feed_forward_net.1} parent=1 // pred_region
      %55 = dma.done [#allocation6], 8192
    $region25: #{feed_forward_net.1} parent=1 // pred_fallthru
      _
    %v56 = vld [vmem:[#allocation2] sm:$0xff]
    %v57 = vld [vmem:[#allocation2 + $0x8] sm:$0xff]
    %v58 = vld [vmem:[#allocation5] sm:$0xff]
    %v59 = vld [vmem:[#allocation5 + $0x8] sm:$0xff]
    %v60 = vld [vmem:[#allocation5 + $0x10] sm:$0xff]
    %v61 = vld [vmem:[#allocation5 + $0x18] sm:$0xff]
    %v62 = vld [vmem:[#allocation5 + $0x20] sm:$0xff]
    %v63 = vld [vmem:[#allocation5 + $0x28] sm:$0xff]
    %v64 = vld [vmem:[#allocation5 + $0x30] sm:$0xff]
    %v65 = vld [vmem:[#allocation5 + $0x38] sm:$0xff]
    %v66 = vld [vmem:[#allocation5 + $0x40] sm:$0xff]
    %v67 = vld [vmem:[#allocation5 + $0x48] sm:$0xff]
    %v68 = vld [vmem:[#allocation5 + $0x50] sm:$0xff]
    %v69 = vld [vmem:[#allocation5 + $0x58] sm:$0xff]
    %v70 = vld [vmem:[#allocation5 + $0x60] sm:$0xff]
    %v71 = vld [vmem:[#allocation5 + $0x68] sm:$0xff]
    %v72 = vld [vmem:[#allocation5 + $0x70] sm:$0xff]
    %v73 = vld [vmem:[#allocation5 + $0x78] sm:$0xff]
    %v74 = vld [vmem:[#allocation5 + $0x80] sm:$0xff]
    %v75 = vld [vmem:[#allocation5 + $0x88] sm:$0xff]
    %v76 = vld [vmem:[#allocation5 + $0x90] sm:$0xff]
    %v77 = vld [vmem:[#allocation5 + $0x98] sm:$0xff]
    %v78 = vld [vmem:[#allocation5 + $0xa0] sm:$0xff]
    %v79 = vld [vmem:[#allocation5 + $0xa8] sm:$0xff]
    %v80 = vld [vmem:[#allocation5 + $0xb0] sm:$0xff]
    %v81 = vld [vmem:[#allocation5 + $0xb8] sm:$0xff]
    %v82 = vld [vmem:[#allocation5 + $0xc0] sm:$0xff]
    %v83 = vld [vmem:[#allocation5 + $0xc8] sm:$0xff]
    %v84 = vld [vmem:[#allocation5 + $0xd0] sm:$0xff]
    %v85 = vld [vmem:[#allocation5 + $0xd8] sm:$0xff]
    %v86 = vld [vmem:[#allocation5 + $0xe0] sm:$0xff]
    %v87 = vld [vmem:[#allocation5 + $0xe8] sm:$0xff]
    %v88 = vld [vmem:[#allocation5 + $0xf0] sm:$0xff]
    %v89 = vld [vmem:[#allocation5 + $0xf8] sm:$0xff]
    %v90 = vld [vmem:[#allocation5 + $0x100] sm:$0xff]
    %v91 = vld [vmem:[#allocation5 + $0x108] sm:$0xff]
    %v92 = vld [vmem:[#allocation5 + $0x110] sm:$0xff]
    %v93 = vld [vmem:[#allocation5 + $0x118] sm:$0xff]
    %v94 = vld [vmem:[#allocation5 + $0x120] sm:$0xff]
    %v95 = vld [vmem:[#allocation5 + $0x128] sm:$0xff]
    %v96 = vld [vmem:[#allocation5 + $0x130] sm:$0xff]
    %v97 = vld [vmem:[#allocation5 + $0x138] sm:$0xff]
    %v98 = vld [vmem:[#allocation5 + $0x140] sm:$0xff]
    %v99 = vld [vmem:[#allocation5 + $0x148] sm:$0xff]
    %v100 = vld [vmem:[#allocation5 + $0x150] sm:$0xff]
    %v101 = vld [vmem:[#allocation5 + $0x158] sm:$0xff]
    %v102 = vld [vmem:[#allocation5 + $0x160] sm:$0xff]
    %v103 = vld [vmem:[#allocation5 + $0x168] sm:$0xff]
    %v104 = vld [vmem:[#allocation5 + $0x170] sm:$0xff]
    %v105 = vld [vmem:[#allocation5 + $0x178] sm:$0xff]
    %v106 = vld [vmem:[#allocation5 + $0x180] sm:$0xff]
    %v107 = vld [vmem:[#allocation5 + $0x188] sm:$0xff]
    %v108 = vld [vmem:[#allocation5 + $0x190] sm:$0xff]
    %v109 = vld [vmem:[#allocation5 + $0x198] sm:$0xff]
    %v110 = vld [vmem:[#allocation5 + $0x1a0] sm:$0xff]
    %v111 = vld [vmem:[#allocation5 + $0x1a8] sm:$0xff]
    %v112 = vld [vmem:[#allocation5 + $0x1b0] sm:$0xff]
    %v113 = vld [vmem:[#allocation5 + $0x1b8] sm:$0xff]
    %v114 = vld [vmem:[#allocation5 + $0x1c0] sm:$0xff]
    %v115 = vld [vmem:[#allocation5 + $0x1c8] sm:$0xff]
    %v116 = vld [vmem:[#allocation5 + $0x1d0] sm:$0xff]
    %v117 = vld [vmem:[#allocation5 + $0x1d8] sm:$0xff]
    %v118 = vld [vmem:[#allocation5 + $0x1e0] sm:$0xff]
    %v119 = vld [vmem:[#allocation5 + $0x1e8] sm:$0xff]
    %v120 = vld [vmem:[#allocation5 + $0x1f0] sm:$0xff]
    %v121 = vld [vmem:[#allocation5 + $0x1f8] sm:$0xff]
    %122 = vmatprep.subr.mxu0 %v59
    %123 = vmatpush1.msra.mxu0 %v58
    %124 = vmatprep.subr.mxu0 %v63
    %125 = vmatpush1.msra.mxu0 %v62
    %126 = vmatprep.subr.mxu0 %v67
    %127 = vmatpush1.msra.mxu0 %v66
    %128 = vmatprep.subr.mxu0 %v71
    %129 = vmatpush1.msra.mxu0 %v70
    %130 = vmatprep.subr.mxu0 %v75
    %131 = vmatpush1.msra.mxu0 %v74
    %132 = vmatprep.subr.mxu0 %v79
    %133 = vmatpush1.msra.mxu0 %v78
    %134 = vmatprep.subr.mxu0 %v83
    %135 = vmatpush1.msra.mxu0 %v82
    %136 = vmatprep.subr.mxu0 %v87
    %137 = vmatpush1.msra.mxu0 %v86
    %138 = vmatprep.subr.mxu0 %v91
    %139 = vmatpush1.msra.mxu0 %v90
    %140 = vmatprep.subr.mxu0 %v95
    %141 = vmatpush1.msra.mxu0 %v94
    %142 = vmatprep.subr.mxu0 %v99
    %143 = vmatpush1.msra.mxu0 %v98
    %144 = vmatprep.subr.mxu0 %v103
    %145 = vmatpush1.msra.mxu0 %v102
    %146 = vmatprep.subr.mxu0 %v107
    %147 = vmatpush1.msra.mxu0 %v106
    %148 = vmatprep.subr.mxu0 %v111
    %149 = vmatpush1.msra.mxu0 %v110
    %150 = vmatprep.subr.mxu0 %v115
    %151 = vmatpush1.msra.mxu0 %v114
    %152 = vmatprep.subr.mxu0 %v119
    %153 = vmatpush1.msra.mxu0 %v118
    %154 = vmatprep.subr.mxu0 0.0
    %155 = vmatpush1.msra.mxu0 0.0
    %156 = vmatprep.subr.mxu0 0.0
    %157 = vmatpush1.msra.mxu0 0.0
    %158 = vmatprep.subr.mxu0 0.0
    %159 = vmatpush1.msra.mxu0 0.0
    %160 = vmatprep.subr.mxu0 0.0
    %161 = vmatpush1.msra.mxu0 0.0
    %162 = vmatprep.subr.mxu0 0.0
    %163 = vmatpush1.msra.mxu0 0.0
    %164 = vmatprep.subr.mxu0 0.0
    %165 = vmatpush1.msra.mxu0 0.0
    %166 = vmatprep.subr.mxu0 0.0
    %167 = vmatpush1.msra.mxu0 0.0
    %168 = vmatprep.subr.mxu0 0.0
    %169 = vmatpush1.msra.mxu0 0.0
    %170 = vmatprep.subr.mxu0 0.0
    %171 = vmatpush1.msra.mxu0 0.0
    %172 = vmatprep.subr.mxu0 0.0
    %173 = vmatpush1.msra.mxu0 0.0
    %174 = vmatprep.subr.mxu0 0.0
    %175 = vmatpush1.msra.mxu0 0.0
    %176 = vmatprep.subr.mxu0 0.0
    %177 = vmatpush1.msra.mxu0 0.0
    %178 = vmatprep.subr.mxu0 0.0
    %179 = vmatpush1.msra.mxu0 0.0
    %180 = vmatprep.subr.mxu0 0.0
    %181 = vmatpush1.msra.mxu0 0.0
    %182 = vmatprep.subr.mxu0 0.0
    %183 = vmatpush1.msra.mxu0 0.0
    %184 = vmatprep.subr.mxu0 0.0
    %185 = vmatpush1.msra.mxu0 0.0
    %186 = vmatprep.mubr.f32.mxu0 0.0
    %187 = vmatmul.mubr.f32.gmra.mrb[0].mxu0 %v56
    %v188 = vpop.f32.mrb[0].mxu0
    %v189 = vadd.f32 0.0, %v188
    %v190 = vpop.f32.mrb[0].mxu0
    %v191 = vadd.f32 0.0, %v190
    %192 = vmatprep.mubr.f32.mxu0 0.0
    %193 = vmatmul.mubr.f32.gmra.mrb[0].mxu0 %v57
    %v194 = vpop.f32.mrb[0].mxu0
    %v195 = vadd.f32 0.0, %v194
    %v196 = vpop.f32.mrb[0].mxu0
    %v197 = vadd.f32 0.0, %v196
    %198 = vdwg.mxu0
    %199 = vmatprep.subr.mxu0 %v61
    %200 = vmatpush1.msra.mxu0 %v60
    %201 = vmatprep.subr.mxu0 %v65
    %202 = vmatpush1.msra.mxu0 %v64
    %203 = vmatprep.subr.mxu0 %v69
    %204 = vmatpush1.msra.mxu0 %v68
    %205 = vmatprep.subr.mxu0 %v73
    %206 = vmatpush1.msra.mxu0 %v72
    %207 = vmatprep.subr.mxu0 %v77
    %208 = vmatpush1.msra.mxu0 %v76
    %209 = vmatprep.subr.mxu0 %v81
    %210 = vmatpush1.msra.mxu0 %v80
    %211 = vmatprep.subr.mxu0 %v85
    %212 = vmatpush1.msra.mxu0 %v84
    %213 = vmatprep.subr.mxu0 %v89
    %214 = vmatpush1.msra.mxu0 %v88
    %215 = vmatprep.subr.mxu0 %v93
    %216 = vmatpush1.msra.mxu0 %v92
    %217 = vmatprep.subr.mxu0 %v97
    %218 = vmatpush1.msra.mxu0 %v96
    %219 = vmatprep.subr.mxu0 %v101
    %220 = vmatpush1.msra.mxu0 %v100
    %221 = vmatprep.subr.mxu0 %v105
    %222 = vmatpush1.msra.mxu0 %v104
    %223 = vmatprep.subr.mxu0 %v109
    %224 = vmatpush1.msra.mxu0 %v108
    %225 = vmatprep.subr.mxu0 %v113
    %226 = vmatpush1.msra.mxu0 %v112
    %227 = vmatprep.subr.mxu0 %v117
    %228 = vmatpush1.msra.mxu0 %v116
    %229 = vmatprep.subr.mxu0 %v121
    %230 = vmatpush1.msra.mxu0 %v120
    %231 = vmatprep.subr.mxu0 0.0
    %232 = vmatpush1.msra.mxu0 0.0
    %233 = vmatprep.subr.mxu0 0.0
    %234 = vmatpush1.msra.mxu0 0.0
    %235 = vmatprep.subr.mxu0 0.0
    %236 = vmatpush1.msra.mxu0 0.0
    %237 = vmatprep.subr.mxu0 0.0
    %238 = vmatpush1.msra.mxu0 0.0
    %239 = vmatprep.subr.mxu0 0.0
    %240 = vmatpush1.msra.mxu0 0.0
    %241 = vmatprep.subr.mxu0 0.0
    %242 = vmatpush1.msra.mxu0 0.0
    %243 = vmatprep.subr.mxu0 0.0
    %244 = vmatpush1.msra.mxu0 0.0
    %245 = vmatprep.subr.mxu0 0.0
    %246 = vmatpush1.msra.mxu0 0.0
    %247 = vmatprep.subr.mxu0 0.0
    %248 = vmatpush1.msra.mxu0 0.0
    %249 = vmatprep.subr.mxu0 0.0
    %250 = vmatpush1.msra.mxu0 0.0
    %251 = vmatprep.subr.mxu0 0.0
    %252 = vmatpush1.msra.mxu0 0.0
    %253 = vmatprep.subr.mxu0 0.0
    %254 = vmatpush1.msra.mxu0 0.0
    %255 = vmatprep.subr.mxu0 0.0
    %256 = vmatpush1.msra.mxu0 0.0
    %257 = vmatprep.subr.mxu0 0.0
    %258 = vmatpush1.msra.mxu0 0.0
    %259 = vmatprep.subr.mxu0 0.0
    %260 = vmatpush1.msra.mxu0 0.0
    %261 = vmatprep.subr.mxu0 0.0
    %262 = vmatpush1.msra.mxu0 0.0
    %263 = vmatprep.mubr.f32.mxu0 0.0
    %264 = vmatmul.mubr.f32.gmra.mrb[0].mxu0 %v56
    %v265 = vpop.f32.mrb[0].mxu0
    %v266 = vadd.f32 0.0, %v265
    %v267 = vpop.f32.mrb[0].mxu0
    %v268 = vadd.f32 0.0, %v267
    %269 = vmatprep.mubr.f32.mxu0 0.0
    %270 = vmatmul.mubr.f32.gmra.mrb[0].mxu0 %v57
    %v271 = vpop.f32.mrb[0].mxu0
    %v272 = vadd.f32 0.0, %v271
    %v273 = vpop.f32.mrb[0].mxu0
    %v274 = vadd.f32 0.0, %v273
    %275 = vdwg.mxu0
    %v276 = vmul.f32 %v189, 0.5
    %v277 = vmul.f32 %v191, 0.5
    %v278 = vmul.f32 %v266, 0.5
    %v279 = vmul.f32 %v268, 0.5
    %v280 = vmul.f32 %v195, 0.5
    %v281 = vmul.f32 %v197, 0.5
    %v282 = vmul.f32 %v272, 0.5
    %v283 = vmul.f32 %v274, 0.5
    %v284 = vmul.f32 %v189, %v189
    %v285 = vmul.f32 %v191, %v191
    %v286 = vmul.f32 %v266, %v266
    %v287 = vmul.f32 %v268, %v268
    %v288 = vmul.f32 %v195, %v195
    %v289 = vmul.f32 %v197, %v197
    %v290 = vmul.f32 %v272, %v272
    %v291 = vmul.f32 %v274, %v274
    %v292 = vmul.f32 %v284, %v189
    %v293 = vmul.f32 %v285, %v191
    %v294 = vmul.f32 %v286, %v266
    %v295 = vmul.f32 %v287, %v268
    %v296 = vmul.f32 %v288, %v195
    %v297 = vmul.f32 %v289, %v197
    %v298 = vmul.f32 %v290, %v272
    %v299 = vmul.f32 %v291, %v274
    %v300 = vmul.f32 %v292, 0.044715
    %v301 = vmul.f32 %v293, 0.044715
    %v302 = vmul.f32 %v294, 0.044715
    %v303 = vmul.f32 %v295, 0.044715
    %v304 = vmul.f32 %v296, 0.044715
    %v305 = vmul.f32 %v297, 0.044715
    %v306 = vmul.f32 %v298, 0.044715
    %v307 = vmul.f32 %v299, 0.044715
    %v308 = vadd.f32 %v189, %v300
    %v309 = vadd.f32 %v191, %v301
    %v310 = vadd.f32 %v266, %v302
    %v311 = vadd.f32 %v268, %v303
    %v312 = vadd.f32 %v195, %v304
    %v313 = vadd.f32 %v197, %v305
    %v314 = vadd.f32 %v272, %v306
    %v315 = vadd.f32 %v274, %v307
    %v316 = vmul.f32 %v308, 0.7978846
    %v317 = vmul.f32 %v309, 0.7978846
    %v318 = vmul.f32 %v310, 0.7978846
    %v319 = vmul.f32 %v311, 0.7978846
    %v320 = vmul.f32 %v312, 0.7978846
    %v321 = vmul.f32 %v313, 0.7978846
    %v322 = vmul.f32 %v314, 0.7978846
    %v323 = vmul.f32 %v315, 0.7978846
    %v324 = vtanh.pop %v316
    %v325 = vtanh.pop %v317
    %v326 = vtanh.pop %v318
    %v327 = vtanh.pop %v319
    %v328 = vtanh.pop %v320
    %v329 = vtanh.pop %v321
    %v330 = vtanh.pop %v322
    %v331 = vtanh.pop %v323
    %v332 = vadd.f32 %v324, 1.0
    %v333 = vadd.f32 %v325, 1.0
    %v334 = vadd.f32 %v326, 1.0
    %v335 = vadd.f32 %v327, 1.0
    %v336 = vadd.f32 %v328, 1.0
    %v337 = vadd.f32 %v329, 1.0
    %v338 = vadd.f32 %v330, 1.0
    %v339 = vadd.f32 %v331, 1.0
    %v340 = vmul.f32 %v276, %v332
    %v341 = vmul.f32 %v277, %v333
    %v342 = vmul.f32 %v278, %v334
    %v343 = vmul.f32 %v279, %v335
    %v344 = vmul.f32 %v280, %v336
    %v345 = vmul.f32 %v281, %v337
    %v346 = vmul.f32 %v282, %v338
    %v347 = vmul.f32 %v283, %v339
    %v348 = vld [vmem:[#allocation7] sm:$0xff]
    %v349 = vld [vmem:[#allocation7 + $0x8] sm:$0xff]
    %v350 = vld [vmem:[#allocation7 + $0x10] sm:$0xff]
    %v351 = vld [vmem:[#allocation7 + $0x18] sm:$0xff]
    %v352 = vld [vmem:[#allocation7 + $0x20] sm:$0xff]
    %v353 = vld [vmem:[#allocation7 + $0x28] sm:$0xff]
    %v354 = vld [vmem:[#allocation7 + $0x30] sm:$0xff]
    %v355 = vld [vmem:[#allocation7 + $0x38] sm:$0xff]
    %v356 = vld [vmem:[#allocation7 + $0x40] sm:$0xff]
    %v357 = vld [vmem:[#allocation7 + $0x48] sm:$0xff]
    %v358 = vld [vmem:[#allocation7 + $0x50] sm:$0xff]
    %v359 = vld [vmem:[#allocation7 + $0x58] sm:$0xff]
    %v360 = vld [vmem:[#allocation7 + $0x60] sm:$0xff]
    %v361 = vld [vmem:[#allocation7 + $0x68] sm:$0xff]
    %v362 = vld [vmem:[#allocation7 + $0x70] sm:$0xff]
    %v363 = vld [vmem:[#allocation7 + $0x78] sm:$0xff]
    %v364 = vld [vmem:[#allocation7 + $0x80] sm:$0xff]
    %v365 = vld [vmem:[#allocation7 + $0x88] sm:$0xff]
    %v366 = vld [vmem:[#allocation7 + $0x90] sm:$0xff]
    %v367 = vld [vmem:[#allocation7 + $0x98] sm:$0xff]
    %v368 = vld [vmem:[#allocation7 + $0xa0] sm:$0xff]
    %v369 = vld [vmem:[#allocation7 + $0xa8] sm:$0xff]
    %v370 = vld [vmem:[#allocation7 + $0xb0] sm:$0xff]
    %v371 = vld [vmem:[#allocation7 + $0xb8] sm:$0xff]
    %v372 = vld [vmem:[#allocation7 + $0xc0] sm:$0xff]
    %v373 = vld [vmem:[#allocation7 + $0xc8] sm:$0xff]
    %v374 = vld [vmem:[#allocation7 + $0xd0] sm:$0xff]
    %v375 = vld [vmem:[#allocation7 + $0xd8] sm:$0xff]
    %v376 = vld [vmem:[#allocation7 + $0xe0] sm:$0xff]
    %v377 = vld [vmem:[#allocation7 + $0xe8] sm:$0xff]
    %v378 = vld [vmem:[#allocation7 + $0xf0] sm:$0xff]
    %v379 = vld [vmem:[#allocation7 + $0xf8] sm:$0xff]
    %v380 = vld [vmem:[#allocation7 + $0x100] sm:$0xff]
    %v381 = vld [vmem:[#allocation7 + $0x108] sm:$0xff]
    %v382 = vld [vmem:[#allocation7 + $0x110] sm:$0xff]
    %v383 = vld [vmem:[#allocation7 + $0x118] sm:$0xff]
    %v384 = vld [vmem:[#allocation7 + $0x120] sm:$0xff]
    %v385 = vld [vmem:[#allocation7 + $0x128] sm:$0xff]
    %v386 = vld [vmem:[#allocation7 + $0x130] sm:$0xff]
    %v387 = vld [vmem:[#allocation7 + $0x138] sm:$0xff]
    %v388 = vld [vmem:[#allocation7 + $0x140] sm:$0xff]
    %v389 = vld [vmem:[#allocation7 + $0x148] sm:$0xff]
    %v390 = vld [vmem:[#allocation7 + $0x150] sm:$0xff]
    %v391 = vld [vmem:[#allocation7 + $0x158] sm:$0xff]
    %v392 = vld [vmem:[#allocation7 + $0x160] sm:$0xff]
    %v393 = vld [vmem:[#allocation7 + $0x168] sm:$0xff]
    %v394 = vld [vmem:[#allocation7 + $0x170] sm:$0xff]
    %v395 = vld [vmem:[#allocation7 + $0x178] sm:$0xff]
    %v396 = vld [vmem:[#allocation7 + $0x180] sm:$0xff]
    %v397 = vld [vmem:[#allocation7 + $0x188] sm:$0xff]
    %v398 = vld [vmem:[#allocation7 + $0x190] sm:$0xff]
    %v399 = vld [vmem:[#allocation7 + $0x198] sm:$0xff]
    %v400 = vld [vmem:[#allocation7 + $0x1a0] sm:$0xff]
    %v401 = vld [vmem:[#allocation7 + $0x1a8] sm:$0xff]
    %v402 = vld [vmem:[#allocation7 + $0x1b0] sm:$0xff]
    %v403 = vld [vmem:[#allocation7 + $0x1b8] sm:$0xff]
    %v404 = vld [vmem:[#allocation7 + $0x1c0] sm:$0xff]
    %v405 = vld [vmem:[#allocation7 + $0x1c8] sm:$0xff]
    %v406 = vld [vmem:[#allocation7 + $0x1d0] sm:$0xff]
    %v407 = vld [vmem:[#allocation7 + $0x1d8] sm:$0xff]
    %v408 = vld [vmem:[#allocation7 + $0x1e0] sm:$0xff]
    %v409 = vld [vmem:[#allocation7 + $0x1e8] sm:$0xff]
    %v410 = vld [vmem:[#allocation7 + $0x1f0] sm:$0xff]
    %v411 = vld [vmem:[#allocation7 + $0x1f8] sm:$0xff]
    %412 = vmatprep.subr.mxu0 0.0
    %413 = vmatpush1.msra.mxu0 %v348
    %414 = vmatprep.subr.mxu0 0.0
    %415 = vmatpush1.msra.mxu0 %v349
    %416 = vmatprep.subr.mxu0 0.0
    %417 = vmatpush1.msra.mxu0 %v350
    %418 = vmatprep.subr.mxu0 0.0
    %419 = vmatpush1.msra.mxu0 %v351
    %420 = vmatprep.subr.mxu0 0.0
    %421 = vmatpush1.msra.mxu0 %v352
    %422 = vmatprep.subr.mxu0 0.0
    %423 = vmatpush1.msra.mxu0 %v353
    %424 = vmatprep.subr.mxu0 0.0
    %425 = vmatpush1.msra.mxu0 %v354
    %426 = vmatprep.subr.mxu0 0.0
    %427 = vmatpush1.msra.mxu0 %v355
    %428 = vmatprep.subr.mxu0 0.0
    %429 = vmatpush1.msra.mxu0 %v356
    %430 = vmatprep.subr.mxu0 0.0
    %431 = vmatpush1.msra.mxu0 %v357
    %432 = vmatprep.subr.mxu0 0.0
    %433 = vmatpush1.msra.mxu0 %v358
    %434 = vmatprep.subr.mxu0 0.0
    %435 = vmatpush1.msra.mxu0 %v359
    %436 = vmatprep.subr.mxu0 0.0
    %437 = vmatpush1.msra.mxu0 %v360
    %438 = vmatprep.subr.mxu0 0.0
    %439 = vmatpush1.msra.mxu0 %v361
    %440 = vmatprep.subr.mxu0 0.0
    %441 = vmatpush1.msra.mxu0 %v362
    %442 = vmatprep.subr.mxu0 0.0
    %443 = vmatpush1.msra.mxu0 %v363
    %444 = vmatprep.subr.mxu0 0.0
    %445 = vmatpush1.msra.mxu0 %v364
    %446 = vmatprep.subr.mxu0 0.0
    %447 = vmatpush1.msra.mxu0 %v365
    %448 = vmatprep.subr.mxu0 0.0
    %449 = vmatpush1.msra.mxu0 %v366
    %450 = vmatprep.subr.mxu0 0.0
    %451 = vmatpush1.msra.mxu0 %v367
    %452 = vmatprep.subr.mxu0 0.0
    %453 = vmatpush1.msra.mxu0 %v368
    %454 = vmatprep.subr.mxu0 0.0
    %455 = vmatpush1.msra.mxu0 %v369
    %456 = vmatprep.subr.mxu0 0.0
    %457 = vmatpush1.msra.mxu0 %v370
    %458 = vmatprep.subr.mxu0 0.0
    %459 = vmatpush1.msra.mxu0 %v371
    %460 = vmatprep.subr.mxu0 0.0
    %461 = vmatpush1.msra.mxu0 %v372
    %462 = vmatprep.subr.mxu0 0.0
    %463 = vmatpush1.msra.mxu0 %v373
    %464 = vmatprep.subr.mxu0 0.0
    %465 = vmatpush1.msra.mxu0 %v374
    %466 = vmatprep.subr.mxu0 0.0
    %467 = vmatpush1.msra.mxu0 %v375
    %468 = vmatprep.subr.mxu0 0.0
    %469 = vmatpush1.msra.mxu0 %v376
    %470 = vmatprep.subr.mxu0 0.0
    %471 = vmatpush1.msra.mxu0 %v377
    %472 = vmatprep.subr.mxu0 0.0
    %473 = vmatpush1.msra.mxu0 %v378
    %474 = vmatprep.subr.mxu0 0.0
    %475 = vmatpush1.msra.mxu0 %v379
    %476 = vmatprep.mubr.f32.mxu0 %v341
    %477 = vmatmul.mubr.f32.gmra.mrb[0].mxu0 %v340
    %v478 = vpop.f32.mrb[0].mxu0
    %v479 = vadd.f32 %v56, %v478
    %v480 = vpop.f32.mrb[0].mxu0
    %481 = vmatprep.mubr.f32.mxu0 %v345
    %482 = vmatmul.mubr.f32.gmra.mrb[0].mxu0 %v344
    %v483 = vpop.f32.mrb[0].mxu0
    %v484 = vadd.f32 %v57, %v483
    %v485 = vpop.f32.mrb[0].mxu0
    %486 = vdwg.mxu0
    %487 = vmatprep.subr.mxu0 0.0
    %488 = vmatpush1.msra.mxu0 %v380
    %489 = vmatprep.subr.mxu0 0.0
    %490 = vmatpush1.msra.mxu0 %v381
    %491 = vmatprep.subr.mxu0 0.0
    %492 = vmatpush1.msra.mxu0 %v382
    %493 = vmatprep.subr.mxu0 0.0
    %494 = vmatpush1.msra.mxu0 %v383
    %495 = vmatprep.subr.mxu0 0.0
    %496 = vmatpush1.msra.mxu0 %v384
    %497 = vmatprep.subr.mxu0 0.0
    %498 = vmatpush1.msra.mxu0 %v385
    %499 = vmatprep.subr.mxu0 0.0
    %500 = vmatpush1.msra.mxu0 %v386
    %501 = vmatprep.subr.mxu0 0.0
    %502 = vmatpush1.msra.mxu0 %v387
    %503 = vmatprep.subr.mxu0 0.0
    %504 = vmatpush1.msra.mxu0 %v388
    %505 = vmatprep.subr.mxu0 0.0
    %506 = vmatpush1.msra.mxu0 %v389
    %507 = vmatprep.subr.mxu0 0.0
    %508 = vmatpush1.msra.mxu0 %v390
    %509 = vmatprep.subr.mxu0 0.0
    %510 = vmatpush1.msra.mxu0 %v391
    %511 = vmatprep.subr.mxu0 0.0
    %512 = vmatpush1.msra.mxu0 %v392
    %513 = vmatprep.subr.mxu0 0.0
    %514 = vmatpush1.msra.mxu0 %v393
    %515 = vmatprep.subr.mxu0 0.0
    %516 = vmatpush1.msra.mxu0 %v394
    %517 = vmatprep.subr.mxu0 0.0
    %518 = vmatpush1.msra.mxu0 %v395
    %519 = vmatprep.subr.mxu0 0.0
    %520 = vmatpush1.msra.mxu0 %v396
    %521 = vmatprep.subr.mxu0 0.0
    %522 = vmatpush1.msra.mxu0 %v397
    %523 = vmatprep.subr.mxu0 0.0
    %524 = vmatpush1.msra.mxu0 %v398
    %525 = vmatprep.subr.mxu0 0.0
    %526 = vmatpush1.msra.mxu0 %v399
    %527 = vmatprep.subr.mxu0 0.0
    %528 = vmatpush1.msra.mxu0 %v400
    %529 = vmatprep.subr.mxu0 0.0
    %530 = vmatpush1.msra.mxu0 %v401
    %531 = vmatprep.subr.mxu0 0.0
    %532 = vmatpush1.msra.mxu0 %v402
    %533 = vmatprep.subr.mxu0 0.0
    %534 = vmatpush1.msra.mxu0 %v403
    %535 = vmatprep.subr.mxu0 0.0
    %536 = vmatpush1.msra.mxu0 %v404
    %537 = vmatprep.subr.mxu0 0.0
    %538 = vmatpush1.msra.mxu0 %v405
    %539 = vmatprep.subr.mxu0 0.0
    %540 = vmatpush1.msra.mxu0 %v406
    %541 = vmatprep.subr.mxu0 0.0
    %542 = vmatpush1.msra.mxu0 %v407
    %543 = vmatprep.subr.mxu0 0.0
    %544 = vmatpush1.msra.mxu0 %v408
    %545 = vmatprep.subr.mxu0 0.0
    %546 = vmatpush1.msra.mxu0 %v409
    %547 = vmatprep.subr.mxu0 0.0
    %548 = vmatpush1.msra.mxu0 %v410
    %549 = vmatprep.subr.mxu0 0.0
    %550 = vmatpush1.msra.mxu0 %v411
    %551 = vmatprep.mubr.f32.mxu0 %v343
    %552 = vmatmul.mubr.f32.gmra.mrb[0].mxu0 %v342
    %v553 = vpop.f32.mrb[0].mxu0
    %v554 = vadd.f32 %v479, %v553
    %v555 = vpop.f32.mrb[0].mxu0
    %556 = vmatprep.mubr.f32.mxu0 %v347
    %557 = vmatmul.mubr.f32.gmra.mrb[0].mxu0 %v346
    %v558 = vpop.f32.mrb[0].mxu0
    %v559 = vadd.f32 %v484, %v558
    %v560 = vpop.f32.mrb[0].mxu0
    %561 = vdwg.mxu0
    %562 = vadd.xlane.f32.xlu0 %v554
    %v563 = vpop.xlane.xlu0 %562
    %564 = vadd.xlane.f32.xlu0 %v559
    %v565 = vpop.xlane.xlu0 %564
    %v566 = vmul.f32 %v563, 0.015625
    %v567 = vmul.f32 %v565, 0.015625
    %v568 = vlaneseq
    %v569 = vand.u32 %v568, 127
    %vm570 = vcmp.lt.s32.totalorder %v569, 64
    %v571 = vsub.f32 %v554, %v566
    %v572 = vsub.f32 %v559, %v567
    %v573 = vsel %vm570, %v571, 0.0
    %v574 = vsel %vm570, %v572, 0.0
    %v575 = vmul.f32 %v573, %v573
    %v576 = vmul.f32 %v574, %v574
    %577 = vadd.xlane.f32.xlu0 %v575
    %v578 = vpop.xlane.xlu0 %577
    %579 = vadd.xlane.f32.xlu0 %v576
    %v580 = vpop.xlane.xlu0 %579
    %v581 = vmul.f32 %v578, 0.015625
    %v582 = vmul.f32 %v580, 0.015625
    %v583 = vadd.f32 %v581, 1e-05
    %v584 = vadd.f32 %v582, 1e-05
    %v585 = vrsqrt.pop %v583
    %v586 = vrsqrt.pop %v584
    %v587 = vmul.f32 %v573, %v585
    %v588 = vmul.f32 %v574, %v586
    %589 = vst [vmem:[#allocation8] sm:$0xff] %v587
    %590 = vst [vmem:[#allocation8 + $0x8] sm:$0xff] %v588
    // Predicated region
    $region26: #{feed_forward_net.1} parent=1 // pred_check
      _
    $region27: #{feed_forward_net.1} parent=1 // pred_check_branch
      %592 = sbr.rel (0) target = $region29
    $region28: #{feed_forward_net.1} parent=1 // pred_region
      %s594 = ssub.s32 256, 256
      %595 = vsyncadd [#allocation4], %s594
      %s596 = sshll.u32 [#allocation8], 4
      %s597 = int_to_ptr.vmem [resolvable:$true] %s596
      %602 = dma.vmem_to_hbm [thread:$0]  %s597, 256, %s3, [#allocation4], 128, 128, 8
    $region29: #{feed_forward_net.1} parent=1 // pred_fallthru
      _
    // Predicated region
    $region30: #{feed_forward_net.1} parent=1 // pred_check
      _
    $region31: #{feed_forward_net.1} parent=1 // pred_check_branch
      %604 = sbr.rel (0) target = $region33
    $region32: #{feed_forward_net.1} parent=1 // pred_region
      %605 = dma.done [#allocation4], 256
    $region33: #{feed_forward_net.1} parent=1 // pred_fallthru
      _
    %606 = vsyncpa [#allocation3], 1
    %607 = vsyncpa [#allocation6], 1
    %608 = vsyncpa [#allocation4], 1

</llo_original>
